<compile_context>
chip_gen: v6e
topology: v6e:2x2x1
jax: 0.10.0
libtpu: 0.0.40
codegen_flags: <defaults>
</compile_context>

<pallas_src>
import jax
import jax.numpy as jnp
from jax.experimental import pallas as pl
from jax.experimental.pallas import tpu as pltpu

ROW = 1            # z[1, ...]
INDICES = (0, 0)   # static column gather indices from the module's forward


def _index_axis1_kernel(x_ref, y_ref, o_ref):
    # Pure scalar path: SMEM loads, scalar ALU adds, SMEM stores.
    for out_i, col in enumerate(INDICES):
        o_ref[out_i] = x_ref[ROW, col] + y_ref[ROW, col]


def index_tensor_axis1(x, y):
    assert x.shape == y.shape and x.ndim == 2
    n_out = len(INDICES)
    return pl.pallas_call(
        _index_axis1_kernel,
        out_shape=jax.ShapeDtypeStruct((n_out,), x.dtype),
        in_specs=[
            pl.BlockSpec(memory_space=pltpu.MemorySpace.SMEM),
            pl.BlockSpec(memory_space=pltpu.MemorySpace.SMEM),
        ],
        out_specs=pl.BlockSpec(memory_space=pltpu.MemorySpace.SMEM),
        cost_estimate=pl.CostEstimate(
            flops=n_out, transcendentals=0,
            bytes_accessed=2 * x.size * x.dtype.itemsize
            + n_out * x.dtype.itemsize),
    )(x, y)


if __name__ == "__main__":
    key = jax.random.PRNGKey(0)
    kx, ky = jax.random.split(key)
    # Shapes from get_example_inputs(): (2, 3) each
    x = jax.random.normal(kx, (2, 3), dtype=jnp.float32)
    y = jax.random.normal(ky, (2, 3), dtype=jnp.float32)

    out = index_tensor_axis1(x, y)
    out = jax.block_until_ready(out)

    # Pure-JAX reference check
    z_ref = x + y
    ref = z_ref[ROW][jnp.array(INDICES)]
    assert out.shape == (len(INDICES),), out.shape
    assert jnp.allclose(out, ref, atol=1e-6), (out, ref)

    print("KERNEL_OK")
</pallas_src>

<mosaic_0001>
module attributes {stable_mosaic.version = 11 : i64} {
  func.func @_index_axis1_kernel(%arg0: memref<2x3xf32, #tpu.memory_space<smem>>, %arg1: memref<2x3xf32, #tpu.memory_space<smem>>, %arg2: memref<2xf32, #tpu.memory_space<smem>>) attributes {dimension_semantics = [], scalar_prefetch = 0 : i64, scratch_operands = 0 : i64, tpu.core_type = #tpu.core_type<tc>} {
    %c1 = arith.constant 1 : index
    %c0 = arith.constant 0 : index
    %0 = memref.load %arg0[%c1, %c0] : memref<2x3xf32, #tpu.memory_space<smem>>
    %c1_0 = arith.constant 1 : index
    %c0_1 = arith.constant 0 : index
    %1 = memref.load %arg1[%c1_0, %c0_1] : memref<2x3xf32, #tpu.memory_space<smem>>
    %2 = arith.addf %0, %1 : f32
    %c0_2 = arith.constant 0 : index
    %3 = memref.load %arg2[%c0_2] : memref<2xf32, #tpu.memory_space<smem>>
    memref.store %2, %arg2[%c0_2] : memref<2xf32, #tpu.memory_space<smem>>
    %c1_3 = arith.constant 1 : index
    %c0_4 = arith.constant 0 : index
    %4 = memref.load %arg0[%c1_3, %c0_4] : memref<2x3xf32, #tpu.memory_space<smem>>
    %c1_5 = arith.constant 1 : index
    %c0_6 = arith.constant 0 : index
    %5 = memref.load %arg1[%c1_5, %c0_6] : memref<2x3xf32, #tpu.memory_space<smem>>
    %6 = arith.addf %4, %5 : f32
    %c1_7 = arith.constant 1 : index
    %7 = memref.load %arg2[%c1_7] : memref<2xf32, #tpu.memory_space<smem>>
    memref.store %6, %arg2[%c1_7] : memref<2xf32, #tpu.memory_space<smem>>
    return
  }
}

</mosaic_0001>

<llo_original>
// kernel: tpu_custom_call.1
$region0: #{tpu_custom_call.1}
  #allocation0 [shape = 'u32[]', space=smem, size = 0x4, offset = 0x4, fixed_abs, tag = 'smem constant byte address 0x4 - core index']
  #allocation1 [shape = 'u32[144,128]{1,0:T(1,128)}', space=vmem, size = 0x12000, scoped, tag = 'internal scratch']
  %s0 = inlined_call_operand.hbm [shape: f32[2,3], index: 0, kind: input, shape index: {}]
  %s1 = inlined_call_operand.hbm [shape: f32[2,3], index: 1, kind: input, shape index: {}]
  %s2 = inlined_call_operand.hbm [shape: f32[2], index: 2, kind: output, shape index: {}]
  %s3 = sld [smem:[#allocation0]]
  $region26: #{tpu_custom_call.1} parent=0
    _
  %s5 = ssub.s32 1, %s3
  %s6 = scalar_select 0, %s5, %s3
  $region1: #{tpu_custom_call.1} parent=0
    #allocation2 [shape = 'u8[1024]{0}', space=smem, size = 0x400, scoped, tag = 'input window, operand 0, single buffered']
    #allocation3 [shape = 's32[1]{0}', space=sflag, size = 0x4, scoped, tag = 'scoped memory for tpu_custom_call.1']
    #allocation4 [shape = 's32[1]{0}', space=sflag, size = 0x4, scoped, tag = 'scoped memory for tpu_custom_call.1']
    #allocation5 [shape = 'u8[1024]{0}', space=smem, size = 0x400, scoped, tag = 'input window, operand 1, single buffered']
    #allocation6 [shape = 's32[1]{0}', space=sflag, size = 0x4, scoped, tag = 'scoped memory for tpu_custom_call.1']
    #allocation7 [shape = 'u8[512]{0}', space=smem, size = 0x200, scoped, tag = 'output window, operand 0, single buffered']
    %7 = vsyncpa [#allocation3], 0
    %8 = vsyncpa [#allocation6], 0
    %9 = vsyncpa [#allocation4], 0
    // Predicated region
    $region2: #{tpu_custom_call.1} parent=1 // pred_check
      _
    $region3: #{tpu_custom_call.1} parent=1 // pred_check_branch
      %11 = sbr.rel (0) target = $region5
    $region4: #{tpu_custom_call.1} parent=1 // pred_region
      %s13 = ssub.s32 32, 32
      %14 = vsyncadd [#allocation3], %s13
      %17 = dma.hbm_to_smem %s0, 32, [#allocation2], [#allocation3]
    $region5: #{tpu_custom_call.1} parent=1 // pred_fallthru
      _
    // Predicated region
    $region6: #{tpu_custom_call.1} parent=1 // pred_check
      _
    $region7: #{tpu_custom_call.1} parent=1 // pred_check_branch
      %19 = sbr.rel (0) target = $region9
    $region8: #{tpu_custom_call.1} parent=1 // pred_region
      %s21 = ssub.s32 32, 32
      %22 = vsyncadd [#allocation6], %s21
      %25 = dma.hbm_to_smem %s1, 32, [#allocation5], [#allocation6]
    $region9: #{tpu_custom_call.1} parent=1 // pred_fallthru
      _
    // Predicated region
    $region10: #{tpu_custom_call.1} parent=1 // pred_check
      _
    $region11: #{tpu_custom_call.1} parent=1 // pred_check_branch
      %27 = sbr.rel (0) target = $region13
    $region12: #{tpu_custom_call.1} parent=1 // pred_region
      %28 = dma.done [#allocation3], 32
    $region13: #{tpu_custom_call.1} parent=1 // pred_fallthru
      _
    // Predicated region
    $region14: #{tpu_custom_call.1} parent=1 // pred_check
      _
    $region15: #{tpu_custom_call.1} parent=1 // pred_check_branch
      %30 = sbr.rel (0) target = $region17
    $region16: #{tpu_custom_call.1} parent=1 // pred_region
      %31 = dma.done [#allocation6], 32
    $region17: #{tpu_custom_call.1} parent=1 // pred_fallthru
      _
    %32 = sfence
    %s33 = sld [smem:[#allocation2 + $0x80]]
    %s34 = sld [smem:[#allocation5 + $0x80]]
    %s35 = sadd.f32 %s33, %s34
    %s36 = scalar_lea.smem [#allocation7], 0
    %37 = sst [smem:[%s36]] %s35
    %s38 = sld [smem:[#allocation2 + $0x80]]
    %s39 = sld [smem:[#allocation5 + $0x80]]
    %s40 = sadd.f32 %s38, %s39
    %s41 = scalar_lea.smem [#allocation7], 1
    %42 = sst [smem:[%s41]] %s40
    // Predicated region
    $region18: #{tpu_custom_call.1} parent=1 // pred_check
      _
    $region19: #{tpu_custom_call.1} parent=1 // pred_check_branch
      %44 = sbr.rel (0) target = $region21
    $region20: #{tpu_custom_call.1} parent=1 // pred_region
      %s46 = ssub.s32 16, 16
      %47 = vsyncadd [#allocation4], %s46
      %50 = dma.smem_to_hbm [#allocation7], 16, %s2, [#allocation4]
    $region21: #{tpu_custom_call.1} parent=1 // pred_fallthru
      _
    // Predicated region
    $region22: #{tpu_custom_call.1} parent=1 // pred_check
      _
    $region23: #{tpu_custom_call.1} parent=1 // pred_check_branch
      %52 = sbr.rel (0) target = $region25
    $region24: #{tpu_custom_call.1} parent=1 // pred_region
      %53 = dma.done [#allocation4], 16
    $region25: #{tpu_custom_call.1} parent=1 // pred_fallthru
      _
    %54 = sfence
    %55 = vsyncpa [#allocation3], 1
    %56 = vsyncpa [#allocation6], 1
    %57 = vsyncpa [#allocation4], 1

</llo_original>
